<compile_context>
chip_gen: v7x
topology: tpu7x:2x2x1
jax: 0.10.0
libtpu: 0.0.40
codegen_flags: <defaults>
</compile_context>

<pallas_src>
import jax
import jax.numpy as jnp
from jax.experimental import pallas as pl
from jax.experimental.pallas import tpu as pltpu

NUM_ACTIONS = 8
NUM_PATROL_STATES = 15
K_PAD = 16            # 15 -> 16 ; the extra column carries the layer-1 bias
H1 = 256              # per-stream hidden 1
H2 = 128              # per-stream hidden 2
F1 = 2 * H1           # 512 : fused layer-1 width  (adv | val)
F2 = 2 * H2           # 256 : fused layer-2 width  (adv | val)


def net_patrol_kernel(x_ref, w1_ref, w2_ref, w3_ref, bias_ref, out_ref, xpad_ref):
    B = x_ref.shape[0]

    # In-kernel K pad 15 -> 16 with the pad column fixed at 1.0 so that the
    # fused layer-1 bias row (W1[15, :]) is applied by the matmul itself.
    xpad_ref[...] = jnp.ones((B, K_PAD), jnp.float32)
    xpad_ref[:, :NUM_PATROL_STATES] = x_ref[...]
    x16 = xpad_ref[...].astype(jnp.bfloat16)                        # [B, 16] bf16

    bias = bias_ref[...]                                            # [2, 256] f32

    # fused layer 1: one MXU push producing [adv1 | val1]; bias folded in W1.
    h1 = jnp.dot(x16, w1_ref[...], preferred_element_type=jnp.float32)
    h1 = jnp.maximum(h1, 0.0)                                       # [B, 512] f32

    # fused layer 2 (block-diagonal weight keeps adv / val independent).
    h2 = jnp.dot(h1.astype(jnp.bfloat16), w2_ref[...],
                 preferred_element_type=jnp.float32) + bias[0:1, :]
    h2 = jnp.maximum(h2, 0.0)                                       # [B, 256] f32

    # fused layer 3: dueling combine pre-folded into W3'/b3', so this matmul
    # yields Q directly and the epilogue is just the store.
    q = jnp.dot(h2.astype(jnp.bfloat16), w3_ref[...],
                preferred_element_type=jnp.float32) + bias[1:2, :NUM_ACTIONS]
    out_ref[...] = q                                                # [B, 8] f32


def net_patrol_forward(x, fused):
    B = x.shape[0]
    args = (x, fused["w1"], fused["w2"], fused["w3"], fused["bias"])

    full2d = lambda a: pl.BlockSpec(a.shape, lambda: (0, 0))

    flops = 2 * B * (K_PAD * F1 + F1 * F2 + F2 * NUM_ACTIONS)
    bytes_accessed = (
        2 * (K_PAD * F1 + F1 * F2 + F2 * NUM_ACTIONS)   # bf16 weights
        + 4 * 2 * F2                                    # f32 packed bias table
        + 4 * B * NUM_PATROL_STATES                     # x
        + 4 * B * NUM_ACTIONS)                          # Q out

    return pl.pallas_call(
        net_patrol_kernel,
        out_shape=jax.ShapeDtypeStruct((B, NUM_ACTIONS), jnp.float32),
        grid=(),
        in_specs=[full2d(a) for a in args],
        out_specs=pl.BlockSpec((B, NUM_ACTIONS), lambda: (0, 0)),
        scratch_shapes=[pltpu.VMEM((B, K_PAD), jnp.float32)],
        cost_estimate=pl.CostEstimate(
            flops=flops, transcendentals=0, bytes_accessed=bytes_accessed),
    )(*args)


def init_params(key):
    """nn.Linear-style init (uniform +/- 1/sqrt(fan_in)); weights stored as
    [in_features, out_features] (transposed vs PyTorch)."""
    def linear(key, fan_in, fan_out):
        kw, kb = jax.random.split(key)
        bound = 1.0 / jnp.sqrt(fan_in)
        w = jax.random.uniform(kw, (fan_in, fan_out), jnp.float32, -bound, bound)
        b = jax.random.uniform(kb, (1, fan_out), jnp.float32, -bound, bound)
        return w, b

    keys = jax.random.split(key, 6)
    w1a, b1a = linear(keys[0], NUM_PATROL_STATES, H1)
    w1v, b1v = linear(keys[1], NUM_PATROL_STATES, H1)
    w2a, b2a = linear(keys[2], H1, H2)
    w2v, b2v = linear(keys[3], H1, H2)
    w3a, b3a = linear(keys[4], H2, NUM_ACTIONS)
    w3v, b3v = linear(keys[5], H2, 1)
    return dict(
        w1a=w1a, b1a=b1a, w1v=w1v, b1v=b1v,
        w2a=w2a, b2a=b2a, w2v=w2v, b2v=b2v,
        w3a=w3a, b3a=b3a, w3v=w3v, b3v=b3v,
    )


def fuse_params(p):
    """Fuse the six Linear layers into 3 wide bf16 weights + one f32 bias table.
    Layer-1 bias lives in W1's pad row; the dueling combine lives in W3/b3."""
    # layer 1: [16, 512] = [w1a | w1v] ; row 15 = [b1a | b1v] (bias fold).
    w1 = jnp.zeros((K_PAD, F1), jnp.float32)
    w1 = w1.at[:NUM_PATROL_STATES, :H1].set(p["w1a"])
    w1 = w1.at[:NUM_PATROL_STATES, H1:].set(p["w1v"])
    w1 = w1.at[K_PAD - 1, :H1].set(p["b1a"][0])
    w1 = w1.at[K_PAD - 1, H1:].set(p["b1v"][0])

    # layer 2: block-diagonal [512, 256] so adv / val stay independent.
    w2 = jnp.zeros((F1, F2), jnp.float32)
    w2 = w2.at[:H1, :H2].set(p["w2a"])
    w2 = w2.at[H1:, H2:].set(p["w2v"])
    b2 = jnp.concatenate([p["b2a"], p["b2v"]], axis=1)              # [1, 256]

    # layer 3 with the dueling combine folded in (all in f32, then cast):
    #   Q_j = h2a @ (w3a[:,j] - mean_k w3a[:,k]) + h2v @ w3v
    #         + (b3a[j] - mean(b3a) + b3v)
    w3a_c = p["w3a"] - jnp.mean(p["w3a"], axis=1, keepdims=True)    # [128, 8]
    w3v_r = jnp.tile(p["w3v"], (1, NUM_ACTIONS))                    # [128, 8]
    w3 = jnp.concatenate([w3a_c, w3v_r], axis=0)                    # [256, 8]
    b3 = p["b3a"] - jnp.mean(p["b3a"], axis=1, keepdims=True) + p["b3v"]   # [1, 8]

    # packed f32 bias table: row 0 = b2 (256 wide), row 1 = b3' (8 wide, rest 0).
    bias = jnp.zeros((2, F2), jnp.float32)
    bias = bias.at[0, :].set(b2[0])
    bias = bias.at[1, :NUM_ACTIONS].set(b3[0])

    return dict(
        w1=w1.astype(jnp.bfloat16),
        w2=w2.astype(jnp.bfloat16),
        w3=w3.astype(jnp.bfloat16),
        bias=bias,
    )


def reference_forward_f32(x, p):
    """Pure-JAX f32 reference of the PyTorch forward (semantics check)."""
    adv = jax.nn.relu(x @ p["w1a"] + p["b1a"])
    val = jax.nn.relu(x @ p["w1v"] + p["b1v"])
    adv = jax.nn.relu(adv @ p["w2a"] + p["b2a"])
    val = jax.nn.relu(val @ p["w2v"] + p["b2v"])
    adv = adv @ p["w3a"] + p["b3a"]
    val = val @ p["w3v"] + p["b3v"]
    return val + adv - jnp.mean(adv, axis=1, keepdims=True)


def reference_forward_fused(x, fused):
    """Same math as the kernel (fused bf16 weights, f32 accumulation)."""
    B = x.shape[0]
    xpad = jnp.concatenate([x, jnp.ones((B, 1), jnp.float32)], axis=1)
    xpad = xpad.astype(jnp.bfloat16)
    bias = fused["bias"]
    h1 = jnp.maximum(
        jnp.dot(xpad, fused["w1"], preferred_element_type=jnp.float32), 0.0)
    h2 = jnp.maximum(
        jnp.dot(h1.astype(jnp.bfloat16), fused["w2"],
                preferred_element_type=jnp.float32) + bias[0:1, :], 0.0)
    return (jnp.dot(h2.astype(jnp.bfloat16), fused["w3"],
                    preferred_element_type=jnp.float32)
            + bias[1:2, :NUM_ACTIONS])


if __name__ == "__main__":
    key = jax.random.PRNGKey(0)
    kx, kp = jax.random.split(key)

    batch = 4
    x = jax.random.normal(kx, (batch, NUM_PATROL_STATES), dtype=jnp.float32)
    params = init_params(kp)
    fused = fuse_params(params)

    out = jax.block_until_ready(net_patrol_forward(x, fused))

    ref_fused = reference_forward_fused(x, fused)
    ref_f32 = reference_forward_f32(x, params)

    assert out.shape == (batch, NUM_ACTIONS)
    assert jnp.allclose(out, ref_fused, atol=1e-2, rtol=1e-2), \
        "mismatch vs fused bf16 reference"
    assert jnp.allclose(out, ref_f32, atol=5e-2, rtol=5e-2), \
        "semantics drift vs f32 reference"

    print("KERNEL_OK")
</pallas_src>

<mosaic_0001>
module attributes {stable_mosaic.version = 11 : i64} {
  func.func @net_patrol_kernel(%arg0: memref<4x15xf32, #tpu.memory_space<vmem>>, %arg1: memref<16x512xbf16, #tpu.memory_space<vmem>>, %arg2: memref<512x256xbf16, #tpu.memory_space<vmem>>, %arg3: memref<256x8xbf16, #tpu.memory_space<vmem>>, %arg4: memref<2x256xf32, #tpu.memory_space<vmem>>, %arg5: memref<4x8xf32, #tpu.memory_space<vmem>>, %arg6: memref<4x16xf32, #tpu.memory_space<vmem>>) attributes {dimension_semantics = [], scalar_prefetch = 0 : i64, scratch_operands = 1 : i64, tpu.core_type = #tpu.core_type<tc>} {
    %cst = arith.constant 1.000000e+00 : f32
    %0 = vector.broadcast %cst : f32 to vector<4x16xf32>
    %c0 = arith.constant 0 : index
    %c0_0 = arith.constant 0 : index
    %1 = vector.load %arg6[%c0, %c0_0] : memref<4x16xf32, #tpu.memory_space<vmem>>, vector<4x16xf32>
    tpu.vector_store %arg6[%c0, %c0_0], %0 {strides = array<i32>} : memref<4x16xf32, #tpu.memory_space<vmem>>, vector<4x16xf32>,
    %c0_1 = arith.constant 0 : index
    %c0_2 = arith.constant 0 : index
    %2 = vector.load %arg0[%c0_1, %c0_2] : memref<4x15xf32, #tpu.memory_space<vmem>>, vector<4x15xf32>
    %c0_3 = arith.constant 0 : index
    %c0_4 = arith.constant 0 : index
    %3 = vector.load %arg6[%c0_3, %c0_4] : memref<4x16xf32, #tpu.memory_space<vmem>>, vector<4x15xf32>
    tpu.vector_store %arg6[%c0_3, %c0_4], %2 {strides = array<i32>} : memref<4x16xf32, #tpu.memory_space<vmem>>, vector<4x15xf32>,
    %c0_5 = arith.constant 0 : index
    %c0_6 = arith.constant 0 : index
    %4 = vector.load %arg6[%c0_5, %c0_6] : memref<4x16xf32, #tpu.memory_space<vmem>>, vector<4x16xf32>
    %5 = arith.truncf %4 : vector<4x16xf32> to vector<4x16xbf16>
    %c0_7 = arith.constant 0 : index
    %c0_8 = arith.constant 0 : index
    %6 = vector.load %arg4[%c0_7, %c0_8] : memref<2x256xf32, #tpu.memory_space<vmem>>, vector<2x256xf32>
    %c0_9 = arith.constant 0 : index
    %c0_10 = arith.constant 0 : index
    %7 = vector.load %arg1[%c0_9, %c0_10] : memref<16x512xbf16, #tpu.memory_space<vmem>>, vector<16x512xbf16>
    %cst_11 = arith.constant dense<0.000000e+00> : vector<4x512xf32>
    %8 = tpu.matmul %5, %7, %cst_11 {dimension_numbers = #tpu.dot_dimension_numbers<[1], [0], [0], [1], [0, 0, 1, 1], [], []>} : vector<4x16xbf16>, vector<16x512xbf16>, vector<4x512xf32> -> vector<4x512xf32>
    %cst_12 = arith.constant 0.000000e+00 : f32
    %9 = vector.broadcast %cst_12 : f32 to vector<4x512xf32>
    %10 = arith.maximumf %8, %9 : vector<4x512xf32>
    %11 = arith.truncf %10 : vector<4x512xf32> to vector<4x512xbf16>
    %c0_13 = arith.constant 0 : index
    %c0_14 = arith.constant 0 : index
    %12 = vector.load %arg2[%c0_13, %c0_14] : memref<512x256xbf16, #tpu.memory_space<vmem>>, vector<512x256xbf16>
    %cst_15 = arith.constant dense<0.000000e+00> : vector<4x256xf32>
    %13 = tpu.matmul %11, %12, %cst_15 {dimension_numbers = #tpu.dot_dimension_numbers<[1], [0], [0], [1], [0, 0, 1, 1], [], []>} : vector<4x512xbf16>, vector<512x256xbf16>, vector<4x256xf32> -> vector<4x256xf32>
    %14 = vector.extract_strided_slice %6 {offsets = [0, 0], sizes = [1, 256], strides = [1, 1]} : vector<2x256xf32> to vector<1x256xf32>
    %15 = vector.broadcast %14 : vector<1x256xf32> to vector<4x256xf32>
    %16 = arith.addf %13, %15 : vector<4x256xf32>
    %cst_16 = arith.constant 0.000000e+00 : f32
    %17 = vector.broadcast %cst_16 : f32 to vector<4x256xf32>
    %18 = arith.maximumf %16, %17 : vector<4x256xf32>
    %19 = arith.truncf %18 : vector<4x256xf32> to vector<4x256xbf16>
    %c0_17 = arith.constant 0 : index
    %c0_18 = arith.constant 0 : index
    %20 = vector.load %arg3[%c0_17, %c0_18] : memref<256x8xbf16, #tpu.memory_space<vmem>>, vector<256x8xbf16>
    %cst_19 = arith.constant dense<0.000000e+00> : vector<4x8xf32>
    %21 = tpu.matmul %19, %20, %cst_19 {dimension_numbers = #tpu.dot_dimension_numbers<[1], [0], [0], [1], [0, 0, 1, 1], [], []>} : vector<4x256xbf16>, vector<256x8xbf16>, vector<4x8xf32> -> vector<4x8xf32>
    %22 = vector.extract_strided_slice %6 {offsets = [1, 0], sizes = [1, 8], strides = [1, 1]} : vector<2x256xf32> to vector<1x8xf32>
    %23 = vector.broadcast %22 : vector<1x8xf32> to vector<4x8xf32>
    %24 = arith.addf %21, %23 : vector<4x8xf32>
    %c0_20 = arith.constant 0 : index
    %c0_21 = arith.constant 0 : index
    %25 = vector.load %arg5[%c0_20, %c0_21] : memref<4x8xf32, #tpu.memory_space<vmem>>, vector<4x8xf32>
    tpu.vector_store %arg5[%c0_20, %c0_21], %24 {strides = array<i32>} : memref<4x8xf32, #tpu.memory_space<vmem>>, vector<4x8xf32>,
    return
  }
}

</mosaic_0001>

<llo_original>
// kernel: tpu_custom_call.1
$region0: #{tpu_custom_call.1}
  #allocation0 [shape = 'u32[]', space=smem, size = 0x4, offset = 0x4, fixed_abs, tag = 'smem constant byte address 0x4 - core index']
  #allocation1 [shape = 'u32[144,128]{1,0:T(1,128)}', space=vmem, size = 0x12000, scoped, tag = 'internal scratch']
  #allocation2 [shape = 'f32[4,16]{1,0:T(4,128)}', space=vmem, size = 0x800, scoped, tag = 'scratch operand']
  %s0 = inlined_call_operand.vmem [shape: f32[4,15], index: 0, kind: input, shape index: {}]
  %s1 = inlined_call_operand.vmem [shape: bf16[16,512], index: 1, kind: input, shape index: {}]
  %s2 = inlined_call_operand.hbm [shape: bf16[512,256], index: 2, kind: input, shape index: {}]
  %s3 = inlined_call_operand.vmem [shape: bf16[256,8], index: 3, kind: input, shape index: {}]
  %s4 = inlined_call_operand.vmem [shape: f32[2,256], index: 4, kind: input, shape index: {}]
  %s5 = inlined_call_operand.hbm [shape: f32[4,8], index: 5, kind: output, shape index: {}]
  %s6 = sld [smem:[#allocation0]]
  $region34: #{tpu_custom_call.1} parent=0
    _
  %s8 = ssub.s32 1, %s6
  %s9 = scalar_select 0, %s8, %s6
  $region1: #{tpu_custom_call.1} parent=0
    #allocation3 [shape = 'u8[262144]{0}', space=vmem, size = 0x40000, scoped, tag = 'input window, operand 2, single buffered']
    #allocation4 [shape = 's32[1]{0}', space=sflag, size = 0x4, scoped, tag = 'scoped memory for tpu_custom_call.1']
    #allocation5 [shape = 's32[1]{0}', space=sflag, size = 0x4, scoped, tag = 'scoped memory for tpu_custom_call.1']
    #allocation6 [shape = 'u8[2048]{0}', space=vmem, size = 0x800, scoped, tag = 'output window, operand 0, single buffered']
    %10 = vsyncpa [#allocation4], 0
    %11 = vsyncpa [#allocation5], 0
    // Predicated region
    $region2: #{tpu_custom_call.1} parent=1 // pred_check
      _
    $region3: #{tpu_custom_call.1} parent=1 // pred_check_branch
      %13 = sbr.rel (0) target = $region5
    $region4: #{tpu_custom_call.1} parent=1 // pred_region
      _
    $region5: #{tpu_custom_call.1} parent=1 // pred_fallthru
      _
    // Predicated region
    $region6: #{tpu_custom_call.1} parent=1 // pred_check
      _
    $region7: #{tpu_custom_call.1} parent=1 // pred_check_branch
      %15 = sbr.rel (0) target = $region9
    $region8: #{tpu_custom_call.1} parent=1 // pred_region
      _
    $region9: #{tpu_custom_call.1} parent=1 // pred_fallthru
      _
    // Predicated region
    $region10: #{tpu_custom_call.1} parent=1 // pred_check
      _
    $region11: #{tpu_custom_call.1} parent=1 // pred_check_branch
      %17 = sbr.rel (0) target = $region13
    $region12: #{tpu_custom_call.1} parent=1 // pred_region
      %s19 = ssub.s32 8192, 8192
      %20 = vsyncadd [#allocation4], %s19
      %s21 = sshll.u32 [#allocation3], 4
      %s22 = int_to_ptr.vmem [resolvable:$true] %s21
      %27 = dma.hbm_to_vmem [thread:$0]  %s2, 8192, %s22, [#allocation4], 128, 128, 8
    $region13: #{tpu_custom_call.1} parent=1 // pred_fallthru
      _
    // Predicated region
    $region14: #{tpu_custom_call.1} parent=1 // pred_check
      _
    $region15: #{tpu_custom_call.1} parent=1 // pred_check_branch
      %29 = sbr.rel (0) target = $region17
    $region16: #{tpu_custom_call.1} parent=1 // pred_region
      _
    $region17: #{tpu_custom_call.1} parent=1 // pred_fallthru
      _
    // Predicated region
    $region18: #{tpu_custom_call.1} parent=1 // pred_check
      _
    $region19: #{tpu_custom_call.1} parent=1 // pred_check_branch
      %31 = sbr.rel (0) target = $region21
    $region20: #{tpu_custom_call.1} parent=1 // pred_region
      _
    $region21: #{tpu_custom_call.1} parent=1 // pred_fallthru
      _
    // Predicated region
    $region22: #{tpu_custom_call.1} parent=1 // pred_check
      _
    $region23: #{tpu_custom_call.1} parent=1 // pred_check_branch
      %33 = sbr.rel (0) target = $region25
    $region24: #{tpu_custom_call.1} parent=1 // pred_region
      %34 = dma.done [#allocation4], 8192
    $region25: #{tpu_custom_call.1} parent=1 // pred_fallthru
      _
    %vm36 = vcmask 125952
    %37 = vst.msk [vmem:[#allocation2] sm:$0xf] %vm36, 1.0
    %v38 = vld [vmem:[%s0] sm:$0xf]
    %vm39 = vcmask 117760
    %40 = vst.msk [vmem:[#allocation2] sm:$0xf] %vm39, %v38
    %v41 = vld [vmem:[#allocation2] sm:$0xf]
    %v42 = vpack.c.bf16 %v41, %v41
    %v43 = vld [vmem:[%s4] sm:$0xf]
    %v44 = vld [vmem:[%s1] sm:$0xff]
    %v45 = vld [vmem:[%s1 + $0x8] sm:$0xff]
    %v46 = vld [vmem:[%s1 + $0x10] sm:$0xff]
    %v47 = vld [vmem:[%s1 + $0x18] sm:$0xff]
    %v52 = vunpack.c.l.b16 %v44
    %v53 = vunpack.c.h.b16 %v44
    %v54 = vunpack.c.l.b16 %v45
    %v55 = vunpack.c.h.b16 %v45
    %v56 = vunpack.c.l.b16 %v46
    %v57 = vunpack.c.h.b16 %v46
    %v58 = vunpack.c.l.b16 %v47
    %v59 = vunpack.c.h.b16 %v47
    %v60 = vpack.c.b16 %v56, %v52
    %v61 = vpack.c.b16 %v57, %v53
    %v62 = vpack.c.b16 %v58, %v54
    %v63 = vpack.c.b16 %v59, %v55
    %vm68 = vcmask 130048
    %v70 = vsel %vm68, %v42, 0
    %72 = vmatprep.subr.bf16.mxu0 %v61
    %73 = vmatpush1.bf16.msra.mxu0 %v60
    %74 = vmatprep.subr.bf16.mxu0 0
    %75 = vmatpush1.bf16.msra.mxu0 0
    %76 = vmatprep.subr.bf16.mxu0 0
    %77 = vmatpush1.bf16.msra.mxu0 0
    %78 = vmatprep.subr.bf16.mxu0 0
    %79 = vmatpush1.bf16.msra.mxu0 0
    %80 = vmatprep.subr.bf16.mxu0 0
    %81 = vmatpush1.bf16.msra.mxu0 0
    %82 = vmatprep.subr.bf16.mxu0 0
    %83 = vmatpush1.bf16.msra.mxu0 0
    %84 = vmatprep.subr.bf16.mxu0 0
    %85 = vmatpush1.bf16.msra.mxu0 0
    %86 = vmatprep.subr.bf16.mxu0 0
    %87 = vmatpush1.bf16.msra.mxu0 0
    %88 = vmatprep.subr.bf16.mxu0 0
    %89 = vmatpush1.bf16.msra.mxu0 0
    %90 = vmatprep.subr.bf16.mxu0 0
    %91 = vmatpush1.bf16.msra.mxu0 0
    %92 = vmatprep.subr.bf16.mxu0 0
    %93 = vmatpush1.bf16.msra.mxu0 0
    %94 = vmatprep.subr.bf16.mxu0 0
    %95 = vmatpush1.bf16.msra.mxu0 0
    %96 = vmatprep.subr.bf16.mxu0 0
    %97 = vmatpush1.bf16.msra.mxu0 0
    %98 = vmatprep.subr.bf16.mxu0 0
    %99 = vmatpush1.bf16.msra.mxu0 0
    %100 = vmatprep.subr.bf16.mxu0 0
    %101 = vmatpush1.bf16.msra.mxu0 0
    %102 = vmatprep.subr.bf16.mxu0 0
    %103 = vmatpush1.bf16.msra.mxu0 0
    %104 = vmatprep.mubr.bf16.mxu0 0
    %105 = vmatmul.mubr.bf16.gmra.mrb[0].mxu0 %v70
    %v106 = vpop.f32.mrb[0].mxu0
    %v107 = vadd.f32 0.0, %v106
    %v108 = vpop.f32.mrb[0].mxu0
    %v109 = vadd.f32 0.0, %v108
    %v110 = vpop.f32.mrb[0].mxu0
    %v111 = vpop.f32.mrb[0].mxu0
    %112 = vdwg.mxu0
    %113 = vmatprep.subr.bf16.mxu0 %v63
    %114 = vmatpush1.bf16.msra.mxu0 %v62
    %115 = vmatprep.subr.bf16.mxu0 0
    %116 = vmatpush1.bf16.msra.mxu0 0
    %117 = vmatprep.subr.bf16.mxu0 0
    %118 = vmatpush1.bf16.msra.mxu0 0
    %119 = vmatprep.subr.bf16.mxu0 0
    %120 = vmatpush1.bf16.msra.mxu0 0
    %121 = vmatprep.subr.bf16.mxu0 0
    %122 = vmatpush1.bf16.msra.mxu0 0
    %123 = vmatprep.subr.bf16.mxu0 0
    %124 = vmatpush1.bf16.msra.mxu0 0
    %125 = vmatprep.subr.bf16.mxu0 0
    %126 = vmatpush1.bf16.msra.mxu0 0
    %127 = vmatprep.subr.bf16.mxu0 0
    %128 = vmatpush1.bf16.msra.mxu0 0
    %129 = vmatprep.subr.bf16.mxu0 0
    %130 = vmatpush1.bf16.msra.mxu0 0
    %131 = vmatprep.subr.bf16.mxu0 0
    %132 = vmatpush1.bf16.msra.mxu0 0
    %133 = vmatprep.subr.bf16.mxu0 0
    %134 = vmatpush1.bf16.msra.mxu0 0
    %135 = vmatprep.subr.bf16.mxu0 0
    %136 = vmatpush1.bf16.msra.mxu0 0
    %137 = vmatprep.subr.bf16.mxu0 0
    %138 = vmatpush1.bf16.msra.mxu0 0
    %139 = vmatprep.subr.bf16.mxu0 0
    %140 = vmatpush1.bf16.msra.mxu0 0
    %141 = vmatprep.subr.bf16.mxu0 0
    %142 = vmatpush1.bf16.msra.mxu0 0
    %143 = vmatprep.subr.bf16.mxu0 0
    %144 = vmatpush1.bf16.msra.mxu0 0
    %145 = vmatprep.mubr.bf16.mxu0 0
    %146 = vmatmul.mubr.bf16.gmra.mrb[0].mxu0 %v70
    %v147 = vpop.f32.mrb[0].mxu0
    %v148 = vadd.f32 0.0, %v147
    %v149 = vpop.f32.mrb[0].mxu0
    %v150 = vadd.f32 0.0, %v149
    %v151 = vpop.f32.mrb[0].mxu0
    %v152 = vpop.f32.mrb[0].mxu0
    %153 = vdwg.mxu0
    %v154 = vmax.f32 %v107, 0.0
    %v155 = vmax.f32 %v109, 0.0
    %v156 = vmax.f32 %v148, 0.0
    %v157 = vmax.f32 %v150, 0.0
    %v158 = vpack.c.bf16 %v154, %v154
    %v159 = vpack.c.bf16 %v155, %v155
    %v160 = vpack.c.bf16 %v156, %v156
    %v161 = vpack.c.bf16 %v157, %v157
    %v162 = vld [vmem:[#allocation3] sm:$0xff]
    %v163 = vld [vmem:[#allocation3 + $0x8] sm:$0xff]
    %v164 = vld [vmem:[#allocation3 + $0x10] sm:$0xff]
    %v165 = vld [vmem:[#allocation3 + $0x18] sm:$0xff]
    %v166 = vld [vmem:[#allocation3 + $0x20] sm:$0xff]
    %v167 = vld [vmem:[#allocation3 + $0x28] sm:$0xff]
    %v168 = vld [vmem:[#allocation3 + $0x30] sm:$0xff]
    %v169 = vld [vmem:[#allocation3 + $0x38] sm:$0xff]
    %v170 = vld [vmem:[#allocation3 + $0x40] sm:$0xff]
    %v171 = vld [vmem:[#allocation3 + $0x48] sm:$0xff]
    %v172 = vld [vmem:[#allocation3 + $0x50] sm:$0xff]
    %v173 = vld [vmem:[#allocation3 + $0x58] sm:$0xff]
    %v174 = vld [vmem:[#allocation3 + $0x60] sm:$0xff]
    %v175 = vld [vmem:[#allocation3 + $0x68] sm:$0xff]
    %v176 = vld [vmem:[#allocation3 + $0x70] sm:$0xff]
    %v177 = vld [vmem:[#allocation3 + $0x78] sm:$0xff]
    %v178 = vld [vmem:[#allocation3 + $0x80] sm:$0xff]
    %v179 = vld [vmem:[#allocation3 + $0x88] sm:$0xff]
    %v180 = vld [vmem:[#allocation3 + $0x90] sm:$0xff]
    %v181 = vld [vmem:[#allocation3 + $0x98] sm:$0xff]
    %v182 = vld [vmem:[#allocation3 + $0xa0] sm:$0xff]
    %v183 = vld [vmem:[#allocation3 + $0xa8] sm:$0xff]
    %v184 = vld [vmem:[#allocation3 + $0xb0] sm:$0xff]
    %v185 = vld [vmem:[#allocation3 + $0xb8] sm:$0xff]
    %v186 = vld [vmem:[#allocation3 + $0xc0] sm:$0xff]
    %v187 = vld [vmem:[#allocation3 + $0xc8] sm:$0xff]
    %v188 = vld [vmem:[#allocation3 + $0xd0] sm:$0xff]
    %v189 = vld [vmem:[#allocation3 + $0xd8] sm:$0xff]
    %v190 = vld [vmem:[#allocation3 + $0xe0] sm:$0xff]
    %v191 = vld [vmem:[#allocation3 + $0xe8] sm:$0xff]
    %v192 = vld [vmem:[#allocation3 + $0xf0] sm:$0xff]
    %v193 = vld [vmem:[#allocation3 + $0xf8] sm:$0xff]
    %v194 = vld [vmem:[#allocation3 + $0x100] sm:$0xff]
    %v195 = vld [vmem:[#allocation3 + $0x108] sm:$0xff]
    %v196 = vld [vmem:[#allocation3 + $0x110] sm:$0xff]
    %v197 = vld [vmem:[#allocation3 + $0x118] sm:$0xff]
    %v198 = vld [vmem:[#allocation3 + $0x120] sm:$0xff]
    %v199 = vld [vmem:[#allocation3 + $0x128] sm:$0xff]
    %v200 = vld [vmem:[#allocation3 + $0x130] sm:$0xff]
    %v201 = vld [vmem:[#allocation3 + $0x138] sm:$0xff]
    %v202 = vld [vmem:[#allocation3 + $0x140] sm:$0xff]
    %v203 = vld [vmem:[#allocation3 + $0x148] sm:$0xff]
    %v204 = vld [vmem:[#allocation3 + $0x150] sm:$0xff]
    %v205 = vld [vmem:[#allocation3 + $0x158] sm:$0xff]
    %v206 = vld [vmem:[#allocation3 + $0x160] sm:$0xff]
    %v207 = vld [vmem:[#allocation3 + $0x168] sm:$0xff]
    %v208 = vld [vmem:[#allocation3 + $0x170] sm:$0xff]
    %v209 = vld [vmem:[#allocation3 + $0x178] sm:$0xff]
    %v210 = vld [vmem:[#allocation3 + $0x180] sm:$0xff]
    %v211 = vld [vmem:[#allocation3 + $0x188] sm:$0xff]
    %v212 = vld [vmem:[#allocation3 + $0x190] sm:$0xff]
    %v213 = vld [vmem:[#allocation3 + $0x198] sm:$0xff]
    %v214 = vld [vmem:[#allocation3 + $0x1a0] sm:$0xff]
    %v215 = vld [vmem:[#allocation3 + $0x1a8] sm:$0xff]
    %v216 = vld [vmem:[#allocation3 + $0x1b0] sm:$0xff]
    %v217 = vld [vmem:[#allocation3 + $0x1b8] sm:$0xff]
    %v218 = vld [vmem:[#allocation3 + $0x1c0] sm:$0xff]
    %v219 = vld [vmem:[#allocation3 + $0x1c8] sm:$0xff]
    %v220 = vld [vmem:[#allocation3 + $0x1d0] sm:$0xff]
    %v221 = vld [vmem:[#allocation3 + $0x1d8] sm:$0xff]
    %v222 = vld [vmem:[#allocation3 + $0x1e0] sm:$0xff]
    %v223 = vld [vmem:[#allocation3 + $0x1e8] sm:$0xff]
    %v224 = vld [vmem:[#allocation3 + $0x1f0] sm:$0xff]
    %v225 = vld [vmem:[#allocation3 + $0x1f8] sm:$0xff]
    %v227 = vlaneseq
    %v228 = vshrl.u32 %v227, 7
    %v229 = vsub.s32 0, %v228
    %v230 = vrot.slane %v43, %v229
    %v231 = vlaneseq
    %v232 = vshrl.u32 %v231, 7
    %v233 = vsub.s32 2, %v232
    %v234 = vrot.slane %v43, %v233
    %v237 = vlaneseq
    %v238 = vshrl.u32 %v237, 7
    %v239 = vsub.s32 0, %v238
    %v240 = vrot.slane %v230, %v239
    %v241 = vlaneseq
    %v242 = vshrl.u32 %v241, 7
    %v243 = vsub.s32 0, %v242
    %v244 = vrot.slane %v234, %v243
    %v309 = vunpack.c.l.b16 %v162
    %v310 = vunpack.c.h.b16 %v162
    %v311 = vunpack.c.l.b16 %v163
    %v312 = vunpack.c.h.b16 %v163
    %v313 = vunpack.c.l.b16 %v164
    %v314 = vunpack.c.h.b16 %v164
    %v315 = vunpack.c.l.b16 %v165
    %v316 = vunpack.c.h.b16 %v165
    %v317 = vunpack.c.l.b16 %v166
    %v318 = vunpack.c.h.b16 %v166
    %v319 = vunpack.c.l.b16 %v167
    %v320 = vunpack.c.h.b16 %v167
    %v321 = vunpack.c.l.b16 %v168
    %v322 = vunpack.c.h.b16 %v168
    %v323 = vunpack.c.l.b16 %v169
    %v324 = vunpack.c.h.b16 %v169
    %v325 = vunpack.c.l.b16 %v170
    %v326 = vunpack.c.h.b16 %v170
    %v327 = vunpack.c.l.b16 %v171
    %v328 = vunpack.c.h.b16 %v171
    %v329 = vunpack.c.l.b16 %v172
    %v330 = vunpack.c.h.b16 %v172
    %v331 = vunpack.c.l.b16 %v173
    %v332 = vunpack.c.h.b16 %v173
    %v333 = vunpack.c.l.b16 %v174
    %v334 = vunpack.c.h.b16 %v174
    %v335 = vunpack.c.l.b16 %v175
    %v336 = vunpack.c.h.b16 %v175
    %v337 = vunpack.c.l.b16 %v176
    %v338 = vunpack.c.h.b16 %v176
    %v339 = vunpack.c.l.b16 %v177
    %v340 = vunpack.c.h.b16 %v177
    %v341 = vunpack.c.l.b16 %v178
    %v342 = vunpack.c.h.b16 %v178
    %v343 = vunpack.c.l.b16 %v179
    %v344 = vunpack.c.h.b16 %v179
    %v345 = vunpack.c.l.b16 %v180
    %v346 = vunpack.c.h.b16 %v180
    %v347 = vunpack.c.l.b16 %v181
    %v348 = vunpack.c.h.b16 %v181
    %v349 = vunpack.c.l.b16 %v182
    %v350 = vunpack.c.h.b16 %v182
    %v351 = vunpack.c.l.b16 %v183
    %v352 = vunpack.c.h.b16 %v183
    %v353 = vunpack.c.l.b16 %v184
    %v354 = vunpack.c.h.b16 %v184
    %v355 = vunpack.c.l.b16 %v185
    %v356 = vunpack.c.h.b16 %v185
    %v357 = vunpack.c.l.b16 %v186
    %v358 = vunpack.c.h.b16 %v186
    %v359 = vunpack.c.l.b16 %v187
    %v360 = vunpack.c.h.b16 %v187
    %v361 = vunpack.c.l.b16 %v188
    %v362 = vunpack.c.h.b16 %v188
    %v363 = vunpack.c.l.b16 %v189
    %v364 = vunpack.c.h.b16 %v189
    %v365 = vunpack.c.l.b16 %v190
    %v366 = vunpack.c.h.b16 %v190
    %v367 = vunpack.c.l.b16 %v191
    %v368 = vunpack.c.h.b16 %v191
    %v369 = vunpack.c.l.b16 %v192
    %v370 = vunpack.c.h.b16 %v192
    %v371 = vunpack.c.l.b16 %v193
    %v372 = vunpack.c.h.b16 %v193
    %v373 = vunpack.c.l.b16 %v194
    %v374 = vunpack.c.h.b16 %v194
    %v375 = vunpack.c.l.b16 %v195
    %v376 = vunpack.c.h.b16 %v195
    %v377 = vunpack.c.l.b16 %v196
    %v378 = vunpack.c.h.b16 %v196
    %v379 = vunpack.c.l.b16 %v197
    %v380 = vunpack.c.h.b16 %v197
    %v381 = vunpack.c.l.b16 %v198
    %v382 = vunpack.c.h.b16 %v198
    %v383 = vunpack.c.l.b16 %v199
    %v384 = vunpack.c.h.b16 %v199
    %v385 = vunpack.c.l.b16 %v200
    %v386 = vunpack.c.h.b16 %v200
    %v387 = vunpack.c.l.b16 %v201
    %v388 = vunpack.c.h.b16 %v201
    %v389 = vunpack.c.l.b16 %v202
    %v390 = vunpack.c.h.b16 %v202
    %v391 = vunpack.c.l.b16 %v203
    %v392 = vunpack.c.h.b16 %v203
    %v393 = vunpack.c.l.b16 %v204
    %v394 = vunpack.c.h.b16 %v204
    %v395 = vunpack.c.l.b16 %v205
    %v396 = vunpack.c.h.b16 %v205
    %v397 = vunpack.c.l.b16 %v206
    %v398 = vunpack.c.h.b16 %v206
    %v399 = vunpack.c.l.b16 %v207
    %v400 = vunpack.c.h.b16 %v207
    %v401 = vunpack.c.l.b16 %v208
    %v402 = vunpack.c.h.b16 %v208
    %v403 = vunpack.c.l.b16 %v209
    %v404 = vunpack.c.h.b16 %v209
    %v405 = vunpack.c.l.b16 %v210
    %v406 = vunpack.c.h.b16 %v210
    %v407 = vunpack.c.l.b16 %v211
    %v408 = vunpack.c.h.b16 %v211
    %v409 = vunpack.c.l.b16 %v212
    %v410 = vunpack.c.h.b16 %v212
    %v411 = vunpack.c.l.b16 %v213
    %v412 = vunpack.c.h.b16 %v213
    %v413 = vunpack.c.l.b16 %v214
    %v414 = vunpack.c.h.b16 %v214
    %v415 = vunpack.c.l.b16 %v215
    %v416 = vunpack.c.h.b16 %v215
    %v417 = vunpack.c.l.b16 %v216
    %v418 = vunpack.c.h.b16 %v216
    %v419 = vunpack.c.l.b16 %v217
    %v420 = vunpack.c.h.b16 %v217
    %v421 = vunpack.c.l.b16 %v218
    %v422 = vunpack.c.h.b16 %v218
    %v423 = vunpack.c.l.b16 %v219
    %v424 = vunpack.c.h.b16 %v219
    %v425 = vunpack.c.l.b16 %v220
    %v426 = vunpack.c.h.b16 %v220
    %v427 = vunpack.c.l.b16 %v221
    %v428 = vunpack.c.h.b16 %v221
    %v429 = vunpack.c.l.b16 %v222
    %v430 = vunpack.c.h.b16 %v222
    %v431 = vunpack.c.l.b16 %v223
    %v432 = vunpack.c.h.b16 %v223
    %v433 = vunpack.c.l.b16 %v224
    %v434 = vunpack.c.h.b16 %v224
    %v435 = vunpack.c.l.b16 %v225
    %v436 = vunpack.c.h.b16 %v225
    %v437 = vpack.c.b16 %v311, %v309
    %v438 = vpack.c.b16 %v312, %v310
    %v439 = vpack.c.b16 %v315, %v313
    %v440 = vpack.c.b16 %v316, %v314
    %v441 = vpack.c.b16 %v319, %v317
    %v442 = vpack.c.b16 %v320, %v318
    %v443 = vpack.c.b16 %v323, %v321
    %v444 = vpack.c.b16 %v324, %v322
    %v445 = vpack.c.b16 %v327, %v325
    %v446 = vpack.c.b16 %v328, %v326
    %v447 = vpack.c.b16 %v331, %v329
    %v448 = vpack.c.b16 %v332, %v330
    %v449 = vpack.c.b16 %v335, %v333
    %v450 = vpack.c.b16 %v336, %v334
    %v451 = vpack.c.b16 %v339, %v337
    %v452 = vpack.c.b16 %v340, %v338
    %v453 = vpack.c.b16 %v343, %v341
    %v454 = vpack.c.b16 %v344, %v342
    %v455 = vpack.c.b16 %v347, %v345
    %v456 = vpack.c.b16 %v348, %v346
    %v457 = vpack.c.b16 %v351, %v349
    %v458 = vpack.c.b16 %v352, %v350
    %v459 = vpack.c.b16 %v355, %v353
    %v460 = vpack.c.b16 %v356, %v354
    %v461 = vpack.c.b16 %v359, %v357
    %v462 = vpack.c.b16 %v360, %v358
    %v463 = vpack.c.b16 %v363, %v361
    %v464 = vpack.c.b16 %v364, %v362
    %v465 = vpack.c.b16 %v367, %v365
    %v466 = vpack.c.b16 %v368, %v366
    %v467 = vpack.c.b16 %v371, %v369
    %v468 = vpack.c.b16 %v372, %v370
    %v469 = vpack.c.b16 %v375, %v373
    %v470 = vpack.c.b16 %v376, %v374
    %v471 = vpack.c.b16 %v379, %v377
    %v472 = vpack.c.b16 %v380, %v378
    %v473 = vpack.c.b16 %v383, %v381
    %v474 = vpack.c.b16 %v384, %v382
    %v475 = vpack.c.b16 %v387, %v385
    %v476 = vpack.c.b16 %v388, %v386
    %v477 = vpack.c.b16 %v391, %v389
    %v478 = vpack.c.b16 %v392, %v390
    %v479 = vpack.c.b16 %v395, %v393
    %v480 = vpack.c.b16 %v396, %v394
    %v481 = vpack.c.b16 %v399, %v397
    %v482 = vpack.c.b16 %v400, %v398
    %v483 = vpack.c.b16 %v403, %v401
    %v484 = vpack.c.b16 %v404, %v402
    %v485 = vpack.c.b16 %v407, %v405
    %v486 = vpack.c.b16 %v408, %v406
    %v487 = vpack.c.b16 %v411, %v409
    %v488 = vpack.c.b16 %v412, %v410
    %v489 = vpack.c.b16 %v415, %v413
    %v490 = vpack.c.b16 %v416, %v414
    %v491 = vpack.c.b16 %v419, %v417
    %v492 = vpack.c.b16 %v420, %v418
    %v493 = vpack.c.b16 %v423, %v421
    %v494 = vpack.c.b16 %v424, %v422
    %v495 = vpack.c.b16 %v427, %v425
    %v496 = vpack.c.b16 %v428, %v426
    %v497 = vpack.c.b16 %v431, %v429
    %v498 = vpack.c.b16 %v432, %v430
    %v499 = vpack.c.b16 %v435, %v433
    %v500 = vpack.c.b16 %v436, %v434
    %565 = vmatprep.subr.bf16.mxu0 %v438
    %566 = vmatpush1.bf16.msra.mxu0 %v437
    %567 = vmatprep.subr.bf16.mxu0 %v440
    %568 = vmatpush1.bf16.msra.mxu0 %v439
    %569 = vmatprep.subr.bf16.mxu0 %v442
    %570 = vmatpush1.bf16.msra.mxu0 %v441
    %571 = vmatprep.subr.bf16.mxu0 %v444
    %572 = vmatpush1.bf16.msra.mxu0 %v443
    %573 = vmatprep.subr.bf16.mxu0 %v446
    %574 = vmatpush1.bf16.msra.mxu0 %v445
    %575 = vmatprep.subr.bf16.mxu0 %v448
    %576 = vmatpush1.bf16.msra.mxu0 %v447
    %577 = vmatprep.subr.bf16.mxu0 %v450
    %578 = vmatpush1.bf16.msra.mxu0 %v449
    %579 = vmatprep.subr.bf16.mxu0 %v452
    %580 = vmatpush1.bf16.msra.mxu0 %v451
    %581 = vmatprep.subr.bf16.mxu0 %v454
    %582 = vmatpush1.bf16.msra.mxu0 %v453
    %583 = vmatprep.subr.bf16.mxu0 %v456
    %584 = vmatpush1.bf16.msra.mxu0 %v455
    %585 = vmatprep.subr.bf16.mxu0 %v458
    %586 = vmatpush1.bf16.msra.mxu0 %v457
    %587 = vmatprep.subr.bf16.mxu0 %v460
    %588 = vmatpush1.bf16.msra.mxu0 %v459
    %589 = vmatprep.subr.bf16.mxu0 %v462
    %590 = vmatpush1.bf16.msra.mxu0 %v461
    %591 = vmatprep.subr.bf16.mxu0 %v464
    %592 = vmatpush1.bf16.msra.mxu0 %v463
    %593 = vmatprep.subr.bf16.mxu0 %v466
    %594 = vmatpush1.bf16.msra.mxu0 %v465
    %595 = vmatprep.subr.bf16.mxu0 %v468
    %596 = vmatpush1.bf16.msra.mxu0 %v467
    %597 = vmatprep.mubr.bf16.mxu0 %v159
    %598 = vmatmul.mubr.bf16.gmra.mrb[0].mxu0 %v158
    %v599 = vpop.f32.mrb[0].mxu0
    %v600 = vadd.f32 %v240, %v599
    %v601 = vpop.f32.mrb[0].mxu0
    %v602 = vadd.f32 %v244, %v601
    %v603 = vpop.f32.mrb[0].mxu0
    %v604 = vpop.f32.mrb[0].mxu0
    %605 = vdwg.mxu0
    %606 = vmatprep.subr.bf16.mxu0 %v470
    %607 = vmatpush1.bf16.msra.mxu0 %v469
    %608 = vmatprep.subr.bf16.mxu0 %v472
    %609 = vmatpush1.bf16.msra.mxu0 %v471
    %610 = vmatprep.subr.bf16.mxu0 %v474
    %611 = vmatpush1.bf16.msra.mxu0 %v473
    %612 = vmatprep.subr.bf16.mxu0 %v476
    %613 = vmatpush1.bf16.msra.mxu0 %v475
    %614 = vmatprep.subr.bf16.mxu0 %v478
    %615 = vmatpush1.bf16.msra.mxu0 %v477
    %616 = vmatprep.subr.bf16.mxu0 %v480
    %617 = vmatpush1.bf16.msra.mxu0 %v479
    %618 = vmatprep.subr.bf16.mxu0 %v482
    %619 = vmatpush1.bf16.msra.mxu0 %v481
    %620 = vmatprep.subr.bf16.mxu0 %v484
    %621 = vmatpush1.bf16.msra.mxu0 %v483
    %622 = vmatprep.subr.bf16.mxu0 %v486
    %623 = vmatpush1.bf16.msra.mxu0 %v485
    %624 = vmatprep.subr.bf16.mxu0 %v488
    %625 = vmatpush1.bf16.msra.mxu0 %v487
    %626 = vmatprep.subr.bf16.mxu0 %v490
    %627 = vmatpush1.bf16.msra.mxu0 %v489
    %628 = vmatprep.subr.bf16.mxu0 %v492
    %629 = vmatpush1.bf16.msra.mxu0 %v491
    %630 = vmatprep.subr.bf16.mxu0 %v494
    %631 = vmatpush1.bf16.msra.mxu0 %v493
    %632 = vmatprep.subr.bf16.mxu0 %v496
    %633 = vmatpush1.bf16.msra.mxu0 %v495
    %634 = vmatprep.subr.bf16.mxu0 %v498
    %635 = vmatpush1.bf16.msra.mxu0 %v497
    %636 = vmatprep.subr.bf16.mxu0 %v500
    %637 = vmatpush1.bf16.msra.mxu0 %v499
    %638 = vmatprep.mubr.bf16.mxu0 %v161
    %639 = vmatmul.mubr.bf16.gmra.mrb[0].mxu0 %v160
    %v640 = vpop.f32.mrb[0].mxu0
    %v641 = vadd.f32 %v600, %v640
    %v642 = vpop.f32.mrb[0].mxu0
    %v643 = vadd.f32 %v602, %v642
    %v644 = vpop.f32.mrb[0].mxu0
    %v645 = vpop.f32.mrb[0].mxu0
    %646 = vdwg.mxu0
    %v647 = vmax.f32 %v641, 0.0
    %v648 = vmax.f32 %v643, 0.0
    %v649 = vpack.c.bf16 %v647, %v647
    %v650 = vpack.c.bf16 %v648, %v648
    %v651 = vld [vmem:[%s3] sm:$0xf]
    %v652 = vld [vmem:[%s3 + $0x4] sm:$0xf]
    %v653 = vld [vmem:[%s3 + $0x8] sm:$0xf]
    %v654 = vld [vmem:[%s3 + $0xc] sm:$0xf]
    %v655 = vld [vmem:[%s3 + $0x10] sm:$0xf]
    %v656 = vld [vmem:[%s3 + $0x14] sm:$0xf]
    %v657 = vld [vmem:[%s3 + $0x18] sm:$0xf]
    %v658 = vld [vmem:[%s3 + $0x1c] sm:$0xf]
    %v659 = vld [vmem:[%s3 + $0x20] sm:$0xf]
    %v660 = vld [vmem:[%s3 + $0x24] sm:$0xf]
    %v661 = vld [vmem:[%s3 + $0x28] sm:$0xf]
    %v662 = vld [vmem:[%s3 + $0x2c] sm:$0xf]
    %v663 = vld [vmem:[%s3 + $0x30] sm:$0xf]
    %v664 = vld [vmem:[%s3 + $0x34] sm:$0xf]
    %v665 = vld [vmem:[%s3 + $0x38] sm:$0xf]
    %v666 = vld [vmem:[%s3 + $0x3c] sm:$0xf]
    %v667 = vld [vmem:[%s3 + $0x40] sm:$0xf]
    %v668 = vld [vmem:[%s3 + $0x44] sm:$0xf]
    %v669 = vld [vmem:[%s3 + $0x48] sm:$0xf]
    %v670 = vld [vmem:[%s3 + $0x4c] sm:$0xf]
    %v671 = vld [vmem:[%s3 + $0x50] sm:$0xf]
    %v672 = vld [vmem:[%s3 + $0x54] sm:$0xf]
    %v673 = vld [vmem:[%s3 + $0x58] sm:$0xf]
    %v674 = vld [vmem:[%s3 + $0x5c] sm:$0xf]
    %v675 = vld [vmem:[%s3 + $0x60] sm:$0xf]
    %v676 = vld [vmem:[%s3 + $0x64] sm:$0xf]
    %v677 = vld [vmem:[%s3 + $0x68] sm:$0xf]
    %v678 = vld [vmem:[%s3 + $0x6c] sm:$0xf]
    %v679 = vld [vmem:[%s3 + $0x70] sm:$0xf]
    %v680 = vld [vmem:[%s3 + $0x74] sm:$0xf]
    %v681 = vld [vmem:[%s3 + $0x78] sm:$0xf]
    %v682 = vld [vmem:[%s3 + $0x7c] sm:$0xf]
    %v683 = vlaneseq
    %v684 = vshrl.u32 %v683, 7
    %v685 = vsub.s32 1, %v684
    %v686 = vrot.slane %v43, %v685
    %v719 = vunpack.c.l.b16 %v651
    %v720 = vunpack.c.l.b16 %v652
    %v721 = vunpack.c.l.b16 %v653
    %v722 = vunpack.c.l.b16 %v654
    %v723 = vunpack.c.l.b16 %v655
    %v724 = vunpack.c.l.b16 %v656
    %v725 = vunpack.c.l.b16 %v657
    %v726 = vunpack.c.l.b16 %v658
    %v727 = vunpack.c.l.b16 %v659
    %v728 = vunpack.c.l.b16 %v660
    %v729 = vunpack.c.l.b16 %v661
    %v730 = vunpack.c.l.b16 %v662
    %v731 = vunpack.c.l.b16 %v663
    %v732 = vunpack.c.l.b16 %v664
    %v733 = vunpack.c.l.b16 %v665
    %v734 = vunpack.c.l.b16 %v666
    %v735 = vunpack.c.l.b16 %v667
    %v736 = vunpack.c.l.b16 %v668
    %v737 = vunpack.c.l.b16 %v669
    %v738 = vunpack.c.l.b16 %v670
    %v739 = vunpack.c.l.b16 %v671
    %v740 = vunpack.c.l.b16 %v672
    %v741 = vunpack.c.l.b16 %v673
    %v742 = vunpack.c.l.b16 %v674
    %v743 = vunpack.c.l.b16 %v675
    %v744 = vunpack.c.l.b16 %v676
    %v745 = vunpack.c.l.b16 %v677
    %v746 = vunpack.c.l.b16 %v678
    %v747 = vunpack.c.l.b16 %v679
    %v748 = vunpack.c.l.b16 %v680
    %v749 = vunpack.c.l.b16 %v681
    %v750 = vunpack.c.l.b16 %v682
    %v751 = vpack.c.b16 %v720, %v719
    %v752 = vpack.c.b16 %v722, %v721
    %v753 = vpack.c.b16 %v724, %v723
    %v754 = vpack.c.b16 %v726, %v725
    %v755 = vpack.c.b16 %v728, %v727
    %v756 = vpack.c.b16 %v730, %v729
    %v757 = vpack.c.b16 %v732, %v731
    %v758 = vpack.c.b16 %v734, %v733
    %v759 = vpack.c.b16 %v736, %v735
    %v760 = vpack.c.b16 %v738, %v737
    %v761 = vpack.c.b16 %v740, %v739
    %v762 = vpack.c.b16 %v742, %v741
    %v763 = vpack.c.b16 %v744, %v743
    %v764 = vpack.c.b16 %v746, %v745
    %v765 = vpack.c.b16 %v748, %v747
    %v766 = vpack.c.b16 %v750, %v749
    %783 = vmatprep.subr.bf16.mxu0 0
    %784 = vmatpush1.bf16.msra.mxu0 %v751
    %785 = vmatprep.subr.bf16.mxu0 0
    %786 = vmatpush1.bf16.msra.mxu0 %v752
    %787 = vmatprep.subr.bf16.mxu0 0
    %788 = vmatpush1.bf16.msra.mxu0 %v753
    %789 = vmatprep.subr.bf16.mxu0 0
    %790 = vmatpush1.bf16.msra.mxu0 %v754
    %791 = vmatprep.subr.bf16.mxu0 0
    %792 = vmatpush1.bf16.msra.mxu0 %v755
    %793 = vmatprep.subr.bf16.mxu0 0
    %794 = vmatpush1.bf16.msra.mxu0 %v756
    %795 = vmatprep.subr.bf16.mxu0 0
    %796 = vmatpush1.bf16.msra.mxu0 %v757
    %797 = vmatprep.subr.bf16.mxu0 0
    %798 = vmatpush1.bf16.msra.mxu0 %v758
    %799 = vmatprep.subr.bf16.mxu0 0
    %800 = vmatpush1.bf16.msra.mxu0 %v759
    %801 = vmatprep.subr.bf16.mxu0 0
    %802 = vmatpush1.bf16.msra.mxu0 %v760
    %803 = vmatprep.subr.bf16.mxu0 0
    %804 = vmatpush1.bf16.msra.mxu0 %v761
    %805 = vmatprep.subr.bf16.mxu0 0
    %806 = vmatpush1.bf16.msra.mxu0 %v762
    %807 = vmatprep.subr.bf16.mxu0 0
    %808 = vmatpush1.bf16.msra.mxu0 %v763
    %809 = vmatprep.subr.bf16.mxu0 0
    %810 = vmatpush1.bf16.msra.mxu0 %v764
    %811 = vmatprep.subr.bf16.mxu0 0
    %812 = vmatpush1.bf16.msra.mxu0 %v765
    %813 = vmatprep.subr.bf16.mxu0 0
    %814 = vmatpush1.bf16.msra.mxu0 %v766
    %815 = vmatprep.mubr.bf16.mxu0 %v650
    %816 = vmatmul.mubr.bf16.gmra.mrb[0].mxu0 %v649
    %v817 = vpop.f32.mrb[0].mxu0
    %v818 = vadd.f32 %v686, %v817
    %v819 = vpop.f32.mrb[0].mxu0
    %v820 = vpop.f32.mrb[0].mxu0
    %v821 = vpop.f32.mrb[0].mxu0
    %822 = vdwg.mxu0
    %vm823 = vcmask 60416
    %824 = vst.msk [vmem:[#allocation6] sm:$0xf] %vm823, %v818
    // Predicated region
    $region26: #{tpu_custom_call.1} parent=1 // pred_check
      _
    $region27: #{tpu_custom_call.1} parent=1 // pred_check_branch
      %826 = sbr.rel (0) target = $region29
    $region28: #{tpu_custom_call.1} parent=1 // pred_region
      %s828 = ssub.s32 64, 64
      %829 = vsyncadd [#allocation5], %s828
      %s831 = sshll.u32 [#allocation6], 4
      %s832 = int_to_ptr.vmem [resolvable:$true] %s831
      %834 = dma.vmem_to_hbm [thread:$0]  %s832, 64, %s5, [#allocation5]
    $region29: #{tpu_custom_call.1} parent=1 // pred_fallthru
      _
    // Predicated region
    $region30: #{tpu_custom_call.1} parent=1 // pred_check
      _
    $region31: #{tpu_custom_call.1} parent=1 // pred_check_branch
      %836 = sbr.rel (0) target = $region33
    $region32: #{tpu_custom_call.1} parent=1 // pred_region
      %837 = dma.done [#allocation5], 64
    $region33: #{tpu_custom_call.1} parent=1 // pred_fallthru
      _
    %838 = vsyncpa [#allocation4], 1
    %839 = vsyncpa [#allocation5], 1

</llo_original>
